<compile_context>
chip_gen: v7x
topology: tpu7x:2x2x1
jax: 0.10.0
libtpu: 0.0.40
codegen_flags: <defaults>
</compile_context>

<pallas_src>
import functools

import numpy as np

import jax
import jax.numpy as jnp
from jax.experimental import pallas as pl
from jax.experimental.pallas import tpu as pltpu


_VMEM = pl.BlockSpec(memory_space=pltpu.MemorySpace.VMEM)
_F32 = jnp.float32


# ----------------------------------------------------------------------------- fused kernel

def _tide_fused_kernel(xt_ref, xp_ref, xf_ref, st_ref, slab_ref, o_ref, *,
                       meta, L, H, B, dos, n_mid, use_ln):
    """Whole TiDE forward on one [B] batch tile; every param is a static slab slice."""

    def w(name):
        off, r, c = meta[name]
        return slab_ref[off:off + r, 0:c]

    def row(name, n):
        off, _, c = meta[name]
        return jnp.broadcast_to(slab_ref[off:off + 1, 0:c], (n, c))

    def layer_norm(x, g, beta):
        mu = jnp.mean(x, axis=-1, keepdims=True)
        xc = x - mu
        var = jnp.mean(xc * xc, axis=-1, keepdims=True)
        return xc * jax.lax.rsqrt(var + 1e-5) * g + beta

    def resblock(x, prefix, n):
        h = jnp.maximum(
            jnp.dot(x, w(prefix + ".w1"), preferred_element_type=_F32) + row(prefix + ".b1", n),
            0.0)
        out = (jnp.dot(h, w(prefix + ".w2"), preferred_element_type=_F32) + row(prefix + ".b2", n)
               + jnp.dot(x, w(prefix + ".ws"), preferred_element_type=_F32) + row(prefix + ".bs", n))
        if use_ln:
            out = layer_norm(out, row(prefix + ".g", n), row(prefix + ".beta", n))
        return out

    def tree_sum(terms):
        ts = list(terms)
        while len(ts) > 1:
            nxt = [ts[i] + ts[i + 1] for i in range(0, len(ts) - 1, 2)]
            if len(ts) % 2:
                nxt.append(ts[-1])
            ts = nxt
        return ts[0]

    xt = xt_ref[...]        # [B, L]   target history
    st = st_ref[...]        # [B, S]   static features

    # ---- batched per-timestep projections (time-major rows: l*B + b / h*B + b)
    p_out = resblock(xp_ref[...], "past", L * B)     # [L*B, Pp]
    f_out = resblock(xf_ref[...], "fut",  H * B)     # [H*B, Fp]

    # ---- encoder layer 0 with input weights pre-split by source (no in-kernel concat)
    dense_t = [row("enc0.b1", B),
               jnp.dot(xt, w("enc0.w1t"), preferred_element_type=_F32),
               jnp.dot(st, w("enc0.w1s"), preferred_element_type=_F32)]
    skip_t = [row("enc0.bs", B),
              jnp.dot(xt, w("enc0.wst"), preferred_element_type=_F32),
              jnp.dot(st, w("enc0.wss"), preferred_element_type=_F32)]
    for l in range(L):
        p_l = p_out[l * B:(l + 1) * B]
        dense_t.append(jnp.dot(p_l, w(f"enc0.w1p{l}"), preferred_element_type=_F32))
        skip_t.append(jnp.dot(p_l, w(f"enc0.wsp{l}"), preferred_element_type=_F32))
    for h in range(H):
        f_h = f_out[h * B:(h + 1) * B]
        dense_t.append(jnp.dot(f_h, w(f"enc0.w1f{h}"), preferred_element_type=_F32))
        skip_t.append(jnp.dot(f_h, w(f"enc0.wsf{h}"), preferred_element_type=_F32))
    dense0 = tree_sum(dense_t)
    skip0 = tree_sum(skip_t)
    cur = (jnp.dot(jnp.maximum(dense0, 0.0), w("enc0.w2"), preferred_element_type=_F32)
           + row("enc0.b2", B) + skip0)
    if use_ln:
        cur = layer_norm(cur, row("enc0.g", B), row("enc0.beta", B))

    # ---- remaining encoder + decoder ResBlocks
    for i in range(n_mid):
        cur = resblock(cur, f"mid{i}", B)
    decoded = cur                                    # [B, H*dos]

    # ---- lookback skip (x_target already resident)
    out = jnp.dot(xt, w("lb.w"), preferred_element_type=_F32) + row("lb.b", B)   # [B, H]

    if use_ln:
        # nn.LayerNorm(1) on a width-1 feature returns exactly its beta (x - mean == 0),
        # so the temporal-decoder ResBlock collapses to a learned constant: skip all of
        # its matmuls and weight loads (bit-identical to the reference).
        out = out + w("td.beta")                     # [1,1] broadcast over [B, H]
    else:
        w1d = w("td.w1d"); w1f = w("td.w1f")
        wsd = w("td.wsd"); wsf = w("td.wsf")
        b1 = row("td.b1", B); bs = row("td.bs", B)
        w2 = w("td.w2"); b2 = row("td.b2", B)
        col = jax.lax.broadcasted_iota(jnp.int32, out.shape, 1)
        for h in range(H):
            dec_h = decoded[:, h * dos:(h + 1) * dos]        # static lane slice
            f_h = f_out[h * B:(h + 1) * B]
            dpre = (jnp.dot(dec_h, w1d, preferred_element_type=_F32)
                    + jnp.dot(f_h, w1f, preferred_element_type=_F32) + b1)
            sk = (jnp.dot(dec_h, wsd, preferred_element_type=_F32)
                  + jnp.dot(f_h, wsf, preferred_element_type=_F32) + bs)
            t = jnp.dot(jnp.maximum(dpre, 0.0), w2, preferred_element_type=_F32) + b2 + sk
            out = out + t * (col == h).astype(_F32)          # place column h

    o_ref[...] = out


# ----------------------------------------------------------------------------- param packing

def pack_tide_params(params, cfg):
    """Pack all parameters into ONE 2-D f32 slab (host-side, once).

    Every parameter starts on an 8-row boundary; meta[name] = (row_off, rows, cols).
    The first encoder layer's input weights are pre-split by source / timestep so the
    kernel never materializes the flattened encoder-input concat.
    """
    L, H = cfg.input_len, cfg.output_len
    Pp = cfg.past_feature_projection_size
    Fp = cfg.future_forcing_projection_size
    S = cfg.static_size
    dos = cfg.decoder_output_size

    entries = []

    def add(name, arr):
        a = np.asarray(arr, dtype=np.float32)
        if a.ndim == 1:
            a = a[None, :]
        entries.append((name, a))

    def add_block(prefix, p):
        for k in ("w1", "b1", "w2", "b2", "ws", "bs", "g", "beta"):
            add(f"{prefix}.{k}", p[k])

    add_block("past", params["past_proj"])
    add_block("fut", params["future_proj"])

    e0 = params["encoder"][0]

    def split_rows(wm):
        wm = np.asarray(wm, np.float32)
        o = 0
        wt = wm[o:o + L]; o += L
        wp = wm[o:o + L * Pp]; o += L * Pp
        wf = wm[o:o + H * Fp]; o += H * Fp
        wss = wm[o:o + S]; o += S
        assert o == wm.shape[0]
        return wt, wp, wf, wss

    w1t, w1p, w1f, w1s = split_rows(e0["w1"])
    wst, wsp, wsf, wss = split_rows(e0["ws"])
    add("enc0.w1t", w1t); add("enc0.w1s", w1s)
    add("enc0.wst", wst); add("enc0.wss", wss)
    for l in range(L):
        add(f"enc0.w1p{l}", w1p[l * Pp:(l + 1) * Pp])
        add(f"enc0.wsp{l}", wsp[l * Pp:(l + 1) * Pp])
    for h in range(H):
        add(f"enc0.w1f{h}", w1f[h * Fp:(h + 1) * Fp])
        add(f"enc0.wsf{h}", wsf[h * Fp:(h + 1) * Fp])
    for k in ("b1", "b2", "w2", "bs", "g", "beta"):
        add(f"enc0.{k}", e0[k])

    mids = list(params["encoder"][1:]) + list(params["decoder"])
    for i, p in enumerate(mids):
        add_block(f"mid{i}", p)

    td = params["temporal"]
    tw1 = np.asarray(td["w1"], np.float32)
    tws = np.asarray(td["ws"], np.float32)
    add("td.w1d", tw1[:dos]); add("td.w1f", tw1[dos:])
    add("td.wsd", tws[:dos]); add("td.wsf", tws[dos:])
    for k in ("b1", "b2", "w2", "bs", "g", "beta"):
        add(f"td.{k}", td[k])

    add("lb.w", params["lb_w"]); add("lb.b", params["lb_b"])

    cols = max(a.shape[1] for _, a in entries)
    meta = {}
    off = 0
    for name, a in entries:
        r, c = a.shape
        meta[name] = (off, r, c)
        off += -(-r // 8) * 8            # 8-row (sublane) alignment per param
    slab = np.zeros((off, cols), np.float32)
    for name, a in entries:
        o, r, c = meta[name]
        slab[o:o + r, :c] = a
    return jnp.asarray(slab), meta


# ----------------------------------------------------------------------------- forward

def tide_forward(slab, x, static, future, *, meta, cfg):
    """Fused Pallas implementation of TiDEModel.forward. Returns [B, H, 1]."""
    B, L, _ = x.shape
    H = cfg.output_len
    output_size = 1
    pf = max(0, cfg.input_size - output_size)
    fi = cfg.future_input_size
    # This fused kernel covers the configuration exercised by the module as instantiated:
    # past features, future forcings, static features and both projection blocks present.
    assert pf > 0 and fi > 0 and cfg.static_size > 0
    assert cfg.past_feature_projection_size > 0 and cfg.future_forcing_projection_size > 0
    # F.dropout is a no-op in eval / p=0.

    x_target = x[:, :, 0]                                                           # [B, L]
    x_past_t = jnp.transpose(x[:, :, output_size:output_size + pf], (1, 0, 2)
                             ).reshape(L * B, pf)                                   # [L*B, pf]
    future_t = jnp.transpose(future, (1, 0, 2)).reshape(H * B, fi)                  # [H*B, fi]

    n_mid = (cfg.num_encoder_layers - 1) + cfg.num_decoder_layers
    kernel = functools.partial(
        _tide_fused_kernel, meta=meta, L=L, H=H, B=B,
        dos=cfg.decoder_output_size, n_mid=n_mid, use_ln=cfg.use_layer_norm)

    out = pl.pallas_call(
        kernel,
        out_shape=jax.ShapeDtypeStruct((B, H), jnp.float32),
        in_specs=[_VMEM] * 5,
        out_specs=_VMEM,
    )(x_target, x_past_t, future_t, static, slab)
    return out.reshape(B, H, 1)


# ----------------------------------------------------------------------------- params / config

def _init_linear(key, din, dout, scale=0.1):
    kw, kb = jax.random.split(key)
    w = jax.random.normal(kw, (din, dout), jnp.float32) * scale   # y = x @ W + b
    b = jax.random.normal(kb, (1, dout), jnp.float32) * scale
    return w, b


def _init_resblock(key, din, dout, hidden):
    k1, k2, k3, k4 = jax.random.split(key, 4)
    w1, b1 = _init_linear(k1, din, hidden)
    w2, b2 = _init_linear(k2, hidden, dout)
    ws, bs = _init_linear(k3, din, dout)
    g = jnp.ones((1, dout), jnp.float32)
    beta = jax.random.normal(k4, (1, dout), jnp.float32) * 0.1
    return dict(w1=w1, b1=b1, w2=w2, b2=b2, ws=ws, bs=bs, g=g, beta=beta)


class TiDEConfig:
    input_len = 8                      # L
    output_len = 4                     # H
    input_size = 3                     # target (1) + 2 past features
    static_size = 4
    future_input_size = 2
    hidden_size = 32
    num_encoder_layers = 2
    num_decoder_layers = 2
    decoder_output_size = 8
    temporal_decoder_hidden_size = 16
    dropout = 0.0
    use_layer_norm = True
    past_feature_projection_size = 4
    future_forcing_projection_size = 4


def init_tide_params(key, cfg):
    L, H = cfg.input_len, cfg.output_len
    output_size = 1
    past_feature_size = max(0, cfg.input_size - output_size)

    enc_dim = L * output_size
    enc_dim += L * (cfg.past_feature_projection_size
                    if cfg.past_feature_projection_size > 0 else past_feature_size)
    fut_feat = (cfg.future_forcing_projection_size
                if cfg.future_forcing_projection_size > 0 else cfg.future_input_size)
    enc_dim += H * fut_feat
    enc_dim += cfg.static_size

    keys = jax.random.split(key, 16)
    ki = iter(keys)
    params = {}
    params["past_proj"] = _init_resblock(next(ki), past_feature_size,
                                         cfg.past_feature_projection_size, cfg.hidden_size)
    params["future_proj"] = _init_resblock(next(ki), cfg.future_input_size,
                                           cfg.future_forcing_projection_size, cfg.hidden_size)
    enc = [_init_resblock(next(ki), enc_dim, cfg.hidden_size, cfg.hidden_size)]
    for _ in range(cfg.num_encoder_layers - 1):
        enc.append(_init_resblock(next(ki), cfg.hidden_size, cfg.hidden_size, cfg.hidden_size))
    params["encoder"] = enc
    dec = []
    for _ in range(cfg.num_decoder_layers - 1):
        dec.append(_init_resblock(next(ki), cfg.hidden_size, cfg.hidden_size, cfg.hidden_size))
    dec.append(_init_resblock(next(ki), cfg.hidden_size,
                              cfg.decoder_output_size * H, cfg.hidden_size))
    params["decoder"] = dec
    temporal_in = cfg.decoder_output_size + fut_feat
    params["temporal"] = _init_resblock(next(ki), temporal_in, output_size,
                                        cfg.temporal_decoder_hidden_size)
    params["lb_w"], params["lb_b"] = _init_linear(next(ki), L, H)   # lookback_skip
    return params


# ----------------------------------------------------------------------------- reference

def _resblock_ref(x, p, uln):
    h = jnp.maximum(x @ p["w1"] + p["b1"], 0.0)
    out = (h @ p["w2"] + p["b2"]) + (x @ p["ws"] + p["bs"])
    if uln:
        mu = jnp.mean(out, axis=-1, keepdims=True)
        var = jnp.mean(jnp.square(out - mu), axis=-1, keepdims=True)
        out = (out - mu) * jax.lax.rsqrt(var + 1e-5) * p["g"] + p["beta"]
    return out


def tide_forward_ref(params, cfg, x, static, future):
    B, L, _ = x.shape
    H = cfg.output_len
    uln = cfg.use_layer_norm
    x_target = x[:, :, 0]
    x_past = x[:, :, 1:]
    x_past_p = _resblock_ref(x_past.reshape(B * L, -1), params["past_proj"], uln)
    future_proj = _resblock_ref(future.reshape(B * H, -1), params["future_proj"], uln).reshape(B, H, -1)
    enc_in = jnp.concatenate([x_target.reshape(B, -1), x_past_p.reshape(B, -1),
                              future_proj.reshape(B, -1), static], axis=1)
    h = enc_in
    for p in params["encoder"]:
        h = _resblock_ref(h, p, uln)
    for p in params["decoder"]:
        h = _resblock_ref(h, p, uln)
    dec_out = h.reshape(B, H, cfg.decoder_output_size)
    ti = jnp.concatenate([dec_out, future_proj], axis=-1).reshape(B * H, -1)
    td = _resblock_ref(ti, params["temporal"], uln).reshape(B, H)
    skip = x_target @ params["lb_w"] + params["lb_b"]
    return (td + skip).reshape(B, H, 1)


# ----------------------------------------------------------------------------- main

if __name__ == "__main__":
    cfg = TiDEConfig()
    B = 2
    key = jax.random.PRNGKey(0)
    kp, kx, ks, kf = jax.random.split(key, 4)

    params = init_tide_params(kp, cfg)
    x = jax.random.normal(kx, (B, cfg.input_len, cfg.input_size), jnp.float32)
    static = jax.random.normal(ks, (B, cfg.static_size), jnp.float32)
    future = jax.random.normal(kf, (B, cfg.output_len, cfg.future_input_size), jnp.float32)

    # Pack once, host-side, OUTSIDE the jitted per-call path (perf feedback item 2).
    slab, meta = pack_tide_params(params, cfg)

    fwd = jax.jit(functools.partial(tide_forward, meta=meta, cfg=cfg))
    out = jax.block_until_ready(fwd(slab, x, static, future))

    ref = jax.block_until_ready(tide_forward_ref(params, cfg, x, static, future))
    assert out.shape == (B, cfg.output_len, 1), out.shape
    assert jnp.allclose(out, ref, rtol=5e-3, atol=5e-3), float(jnp.max(jnp.abs(out - ref)))

    print("KERNEL_OK")
</pallas_src>

<mosaic_0001>
module attributes {stable_mosaic.version = 11 : i64} {
  func.func @_tide_fused_kernel(%arg0: memref<2x8xf32, #tpu.memory_space<vmem>>, %arg1: memref<16x2xf32, #tpu.memory_space<vmem>>, %arg2: memref<8x2xf32, #tpu.memory_space<vmem>>, %arg3: memref<2x4xf32, #tpu.memory_space<vmem>>, %arg4: memref<984x32xf32, #tpu.memory_space<vmem>>, %arg5: memref<2x4xf32, #tpu.memory_space<vmem>>) attributes {dimension_semantics = [], scalar_prefetch = 0 : i64, scratch_operands = 0 : i64, tpu.core_type = #tpu.core_type<tc>} {
    %c0 = arith.constant 0 : index
    %c0_0 = arith.constant 0 : index
    %0 = vector.load %arg0[%c0, %c0_0] : memref<2x8xf32, #tpu.memory_space<vmem>>, vector<2x8xf32>
    %c968 = arith.constant 968 : index
    %c0_1 = arith.constant 0 : index
    %1 = vector.load %arg4[%c968, %c0_1] : memref<984x32xf32, #tpu.memory_space<vmem>>, vector<8x4xf32>
    %cst = arith.constant dense<0.000000e+00> : vector<2x4xf32>
    %2 = tpu.matmul %0, %1, %cst {dimension_numbers = #tpu.dot_dimension_numbers<[1], [0], [0], [1], [0, 0, 1, 1], [], []>} : vector<2x8xf32>, vector<8x4xf32>, vector<2x4xf32> -> vector<2x4xf32>
    %c976 = arith.constant 976 : index
    %c0_2 = arith.constant 0 : index
    %3 = vector.load %arg4[%c976, %c0_2] : memref<984x32xf32, #tpu.memory_space<vmem>>, vector<1x4xf32>
    %4 = vector.shape_cast %3 : vector<1x4xf32> to vector<1x4xf32>
    %5 = vector.broadcast %4 : vector<1x4xf32> to vector<2x4xf32>
    %6 = arith.addf %2, %5 : vector<2x4xf32>
    %c960 = arith.constant 960 : index
    %c0_3 = arith.constant 0 : index
    %7 = vector.load %arg4[%c960, %c0_3] : memref<984x32xf32, #tpu.memory_space<vmem>>, vector<1x1xf32>
    %8 = vector.broadcast %7 : vector<1x1xf32> to vector<2x4xf32>
    %9 = arith.addf %6, %8 : vector<2x4xf32>
    %c0_4 = arith.constant 0 : index
    %c0_5 = arith.constant 0 : index
    %10 = vector.load %arg5[%c0_4, %c0_5] : memref<2x4xf32, #tpu.memory_space<vmem>>, vector<2x4xf32>
    tpu.vector_store %arg5[%c0_4, %c0_5], %9 {strides = array<i32>} : memref<2x4xf32, #tpu.memory_space<vmem>>, vector<2x4xf32>,
    return
  }
}

</mosaic_0001>

<llo_original>
// kernel: tide_forward.1
$region0: #{tide_forward.1}
  #allocation0 [shape = 'u32[]', space=smem, size = 0x4, offset = 0x4, fixed_abs, tag = 'smem constant byte address 0x4 - core index']
  #allocation1 [shape = 'u32[144,128]{1,0:T(1,128)}', space=vmem, size = 0x12000, scoped, tag = 'internal scratch']
  %s0 = inlined_call_operand.vmem [shape: f32[2,8], index: 0, kind: input, shape index: {}]
  %s1 = inlined_call_operand.vmem [shape: f32[16,2], index: 1, kind: input, shape index: {}]
  %s2 = inlined_call_operand.vmem [shape: f32[8,2], index: 2, kind: input, shape index: {}]
  %s3 = inlined_call_operand.vmem [shape: f32[2,4], index: 3, kind: input, shape index: {}]
  %s4 = inlined_call_operand.vmem [shape: f32[984,32], index: 4, kind: input, shape index: {}]
  %s5 = inlined_call_operand.hbm [shape: f32[2,4], index: 5, kind: output, shape index: {}]
  %s6 = sld [smem:[#allocation0]]
  $region30: #{tide_forward.1} parent=0
    _
  %s8 = ssub.s32 1, %s6
  %s9 = scalar_select 0, %s8, %s6
  $region1: #{tide_forward.1} parent=0
    #allocation2 [shape = 'u8[1024]{0}', space=vmem, size = 0x400, scoped, tag = 'output window, operand 0, single buffered']
    #allocation3 [shape = 's32[1]{0}', space=sflag, size = 0x4, scoped, tag = 'scoped memory for tide_forward.1']
    %10 = vsyncpa [#allocation3], 0
    // Predicated region
    $region2: #{tide_forward.1} parent=1 // pred_check
      _
    $region3: #{tide_forward.1} parent=1 // pred_check_branch
      %12 = sbr.rel (0) target = $region5
    $region4: #{tide_forward.1} parent=1 // pred_region
      _
    $region5: #{tide_forward.1} parent=1 // pred_fallthru
      _
    // Predicated region
    $region6: #{tide_forward.1} parent=1 // pred_check
      _
    $region7: #{tide_forward.1} parent=1 // pred_check_branch
      %14 = sbr.rel (0) target = $region9
    $region8: #{tide_forward.1} parent=1 // pred_region
      _
    $region9: #{tide_forward.1} parent=1 // pred_fallthru
      _
    // Predicated region
    $region10: #{tide_forward.1} parent=1 // pred_check
      _
    $region11: #{tide_forward.1} parent=1 // pred_check_branch
      %16 = sbr.rel (0) target = $region13
    $region12: #{tide_forward.1} parent=1 // pred_region
      _
    $region13: #{tide_forward.1} parent=1 // pred_fallthru
      _
    // Predicated region
    $region14: #{tide_forward.1} parent=1 // pred_check
      _
    $region15: #{tide_forward.1} parent=1 // pred_check_branch
      %18 = sbr.rel (0) target = $region17
    $region16: #{tide_forward.1} parent=1 // pred_region
      _
    $region17: #{tide_forward.1} parent=1 // pred_fallthru
      _
    // Predicated region
    $region18: #{tide_forward.1} parent=1 // pred_check
      _
    $region19: #{tide_forward.1} parent=1 // pred_check_branch
      %20 = sbr.rel (0) target = $region21
    $region20: #{tide_forward.1} parent=1 // pred_region
      _
    $region21: #{tide_forward.1} parent=1 // pred_fallthru
      _
    %v21 = vld [vmem:[%s0] sm:$0x3]
    %v22 = vld [vmem:[%s4 + $0x3c8] sm:$0xff]
    %v23 = vld [vmem:[%s4 + $0x3d0] sm:$0x1]
    %v24 = vlaneseq
    %v25 = vshrl.u32 %v24, 7
    %v26 = vsub.s32 0, %v25
    %v27 = vrot.slane %v23, %v26
    %vm28 = vcmask 64512
    %v30 = vsel %vm28, %v21, 0
    %32 = vmatprep.subr.mxu0 0.0
    %33 = vmatpush1.msra.mxu0 %v22
    %34 = vmatprep.subr.mxu0 0.0
    %35 = vmatpush1.msra.mxu0 0.0
    %36 = vmatprep.subr.mxu0 0.0
    %37 = vmatpush1.msra.mxu0 0.0
    %38 = vmatprep.subr.mxu0 0.0
    %39 = vmatpush1.msra.mxu0 0.0
    %40 = vmatprep.subr.mxu0 0.0
    %41 = vmatpush1.msra.mxu0 0.0
    %42 = vmatprep.subr.mxu0 0.0
    %43 = vmatpush1.msra.mxu0 0.0
    %44 = vmatprep.subr.mxu0 0.0
    %45 = vmatpush1.msra.mxu0 0.0
    %46 = vmatprep.subr.mxu0 0.0
    %47 = vmatpush1.msra.mxu0 0.0
    %48 = vmatprep.subr.mxu0 0.0
    %49 = vmatpush1.msra.mxu0 0.0
    %50 = vmatprep.subr.mxu0 0.0
    %51 = vmatpush1.msra.mxu0 0.0
    %52 = vmatprep.subr.mxu0 0.0
    %53 = vmatpush1.msra.mxu0 0.0
    %54 = vmatprep.subr.mxu0 0.0
    %55 = vmatpush1.msra.mxu0 0.0
    %56 = vmatprep.subr.mxu0 0.0
    %57 = vmatpush1.msra.mxu0 0.0
    %58 = vmatprep.subr.mxu0 0.0
    %59 = vmatpush1.msra.mxu0 0.0
    %60 = vmatprep.subr.mxu0 0.0
    %61 = vmatpush1.msra.mxu0 0.0
    %62 = vmatprep.subr.mxu0 0.0
    %63 = vmatpush1.msra.mxu0 0.0
    %64 = vmatprep.subr.mxu0 0.0
    %65 = vmatpush1.msra.mxu0 0.0
    %66 = vmatprep.subr.mxu0 0.0
    %67 = vmatpush1.msra.mxu0 0.0
    %68 = vmatprep.subr.mxu0 0.0
    %69 = vmatpush1.msra.mxu0 0.0
    %70 = vmatprep.subr.mxu0 0.0
    %71 = vmatpush1.msra.mxu0 0.0
    %72 = vmatprep.subr.mxu0 0.0
    %73 = vmatpush1.msra.mxu0 0.0
    %74 = vmatprep.subr.mxu0 0.0
    %75 = vmatpush1.msra.mxu0 0.0
    %76 = vmatprep.subr.mxu0 0.0
    %77 = vmatpush1.msra.mxu0 0.0
    %78 = vmatprep.subr.mxu0 0.0
    %79 = vmatpush1.msra.mxu0 0.0
    %80 = vmatprep.subr.mxu0 0.0
    %81 = vmatpush1.msra.mxu0 0.0
    %82 = vmatprep.subr.mxu0 0.0
    %83 = vmatpush1.msra.mxu0 0.0
    %84 = vmatprep.subr.mxu0 0.0
    %85 = vmatpush1.msra.mxu0 0.0
    %86 = vmatprep.subr.mxu0 0.0
    %87 = vmatpush1.msra.mxu0 0.0
    %88 = vmatprep.subr.mxu0 0.0
    %89 = vmatpush1.msra.mxu0 0.0
    %90 = vmatprep.subr.mxu0 0.0
    %91 = vmatpush1.msra.mxu0 0.0
    %92 = vmatprep.subr.mxu0 0.0
    %93 = vmatpush1.msra.mxu0 0.0
    %94 = vmatprep.subr.mxu0 0.0
    %95 = vmatpush1.msra.mxu0 0.0
    %96 = vmatprep.mubr.f32.mxu0 0.0
    %97 = vmatmul.mubr.f32.gmra.mrb[0].mxu0 %v30
    %v98 = vpop.f32.mrb[0].mxu0
    %v99 = vadd.f32 %v27, %v98
    %v100 = vpop.f32.mrb[0].mxu0
    %101 = vdwg.mxu0
    %v102 = vld [vmem:[%s4 + $0x3c0] sm:$0x1]
    %s104 = vtos %v102
    %v105 = vstv %s104
    %v107 = vadd.f32 %v99, %v105
    %vm108 = vcmask 25600
    %109 = vst.msk [vmem:[#allocation2] sm:$0x3] %vm108, %v107
    // Predicated region
    $region22: #{tide_forward.1} parent=1 // pred_check
      _
    $region23: #{tide_forward.1} parent=1 // pred_check_branch
      %111 = sbr.rel (0) target = $region25
    $region24: #{tide_forward.1} parent=1 // pred_region
      %s113 = ssub.s32 32, 32
      %114 = vsyncadd [#allocation3], %s113
      %s116 = sshll.u32 [#allocation2], 4
      %s117 = int_to_ptr.vmem [resolvable:$true] %s116
      %119 = dma.vmem_to_hbm [thread:$0]  %s117, 32, %s5, [#allocation3]
    $region25: #{tide_forward.1} parent=1 // pred_fallthru
      _
    // Predicated region
    $region26: #{tide_forward.1} parent=1 // pred_check
      _
    $region27: #{tide_forward.1} parent=1 // pred_check_branch
      %121 = sbr.rel (0) target = $region29
    $region28: #{tide_forward.1} parent=1 // pred_region
      %122 = dma.done [#allocation3], 32
    $region29: #{tide_forward.1} parent=1 // pred_fallthru
      _
    %123 = vsyncpa [#allocation3], 1

</llo_original>
